<compile_context>
chip_gen: v5e
topology: v5e:2x2
jax: 0.10.0
libtpu: 0.0.40
codegen_flags: <defaults>
</compile_context>

<pallas_src>
import functools

import jax
import jax.numpy as jnp
from jax import lax
from jax.experimental import pallas as pl
from jax.experimental.pallas import tpu as pltpu


def _round_up(x, m):
    return (x + m - 1) // m * m


def _patch_embed_kernel(x_ref, w_ref, b_ref, o_ref):
    # x_ref: (TILE_M, K)      unfolded patch rows
    # w_ref: (E_pad, K)       flattened conv weight (kept untransposed)
    # b_ref: (1, E_pad) f32   bias
    # o_ref: (TILE_M, E_pad)
    acc = lax.dot_general(
        x_ref[...], w_ref[...],
        dimension_numbers=(((1,), (1,)), ((), ())),   # contract K (lane axis of both)
        preferred_element_type=jnp.float32)
    o_ref[...] = (acc + b_ref[...]).astype(o_ref.dtype)


def vit_patch_embeddings(pixel_values, weight, bias, *, patch_size,
                         compute_dtype=jnp.bfloat16, tile_m=None):
    """ViTPatchEmbeddings.forward.

    pixel_values: (B, C, H, W); weight: (E, C, P, P); bias: (E,).
    Returns (B, num_patches, E), num_patches = (H//P)*(W//P).
    """
    B, C, H, W = pixel_values.shape
    E = weight.shape[0]
    P = patch_size
    if H % P != 0 or W % P != 0:
        raise ValueError(f"spatial dims ({H},{W}) must be divisible by patch_size {P}")
    nh, nw = H // P, W // P
    num_patches = nh * nw
    out_dtype = pixel_values.dtype

    # Cast BEFORE the unfold so the dominant HBM streams are 2-byte.
    x = pixel_values
    w = weight
    if compute_dtype is not None:
        x = x.astype(compute_dtype)
        w = w.astype(compute_dtype)

    # Unfold NCHW pixels into per-patch rows flattened in (C, kh, kw) order
    # (matches Conv2d(kernel=stride=P) reduction order).  No padding of M or K.
    x = x.reshape(B, C, nh, P, nw, P)
    x = jnp.transpose(x, (0, 2, 4, 1, 3, 5))        # (B, nh, nw, C, P, P)
    x = x.reshape(B * num_patches, C * P * P)       # (M, K)
    M, K = x.shape

    # Weight stays (E, K); pad only E so output stores are lane-dense.
    w = w.reshape(E, K)
    E_pad = _round_up(E, 128)
    if E_pad != E:
        w = jnp.pad(w, ((0, E_pad - E), (0, 0)))
    b = jnp.pad(bias.reshape(1, E).astype(jnp.float32), ((0, 0), (0, E_pad - E)))

    # M tiling: cap at ceil(M/2) so grid_m >= 2 when possible (v7x megacore);
    # defaults sized for v5e/v7x VMEM budgets.
    if tile_m is None:
        tile_m = 512 if x.dtype.itemsize <= 2 else 256
    TILE_M = max(16, min(tile_m, _round_up(pl.cdiv(M, 2), 16)))
    if TILE_M >= M:
        TILE_M = M                    # single block == full array dim (always legal)
    grid_m = pl.cdiv(M, TILE_M)

    # Explicit VMEM budget (double-buffered activation/output tiles + resident
    # weight/bias, which default to two buffers even though only DMA'd once).
    vmem_bytes = (2 * TILE_M * K * x.dtype.itemsize
                  + 2 * E_pad * K * w.dtype.itemsize
                  + 2 * TILE_M * E_pad * jnp.dtype(out_dtype).itemsize
                  + 2 * 8 * E_pad * 4)
    vmem_limit = int(min(100 * 2**20, max(32 * 2**20, vmem_bytes * 5 // 4 + 2**20)))

    cost = pl.CostEstimate(
        flops=2 * M * K * E_pad,
        transcendentals=0,
        bytes_accessed=(x.size * x.dtype.itemsize
                        + w.size * w.dtype.itemsize
                        + b.size * b.dtype.itemsize
                        + M * E_pad * jnp.dtype(out_dtype).itemsize),
    )

    out = pl.pallas_call(
        _patch_embed_kernel,
        out_shape=jax.ShapeDtypeStruct((M, E_pad), out_dtype),
        grid_spec=pltpu.PrefetchScalarGridSpec(
            num_scalar_prefetch=0,
            grid=(grid_m,),
            in_specs=[
                pl.BlockSpec((TILE_M, K), lambda i: (i, 0)),    # activations (tiled)
                pl.BlockSpec((E_pad, K), lambda i: (0, 0)),     # weight (resident)
                pl.BlockSpec((1, E_pad), lambda i: (0, 0)),     # bias (resident)
            ],
            out_specs=pl.BlockSpec((TILE_M, E_pad), lambda i: (i, 0)),
        ),
        compiler_params=pltpu.CompilerParams(
            dimension_semantics=("parallel",),
            vmem_limit_bytes=vmem_limit,
        ),
        cost_estimate=cost,
    )(x, w, b)

    if E_pad != E:
        out = out[:, :E]
    return out.reshape(B, num_patches, E)


if __name__ == "__main__":
    # Small shapes consistent with the module's forward:
    # batch=2, channels=4, spatial=16, patch_size=8 -> 4 patches, embed_dim=32.
    B, C, H, W = 2, 4, 16, 16
    P, E = 8, 32

    key = jax.random.PRNGKey(0)
    k_x, k_w, k_b = jax.random.split(key, 3)
    pixel_values = jax.random.normal(k_x, (B, C, H, W), dtype=jnp.float32)
    weight = jax.random.normal(k_w, (E, C, P, P), dtype=jnp.float32) * 0.02
    bias = jax.random.normal(k_b, (E,), dtype=jnp.float32) * 0.02

    # Reference: plain JAX conv-as-patchify (same math as nn.Conv2d stride=P).
    nh, nw = H // P, W // P
    xr = pixel_values.reshape(B, C, nh, P, nw, P)
    xr = jnp.transpose(xr, (0, 2, 4, 1, 3, 5)).reshape(B, nh * nw, C * P * P)
    ref = jnp.einsum("bnk,ek->bne", xr, weight.reshape(E, -1)) + bias

    # Default path: bf16 MXU operands, f32 accumulation.
    fwd = jax.jit(functools.partial(vit_patch_embeddings, patch_size=P))
    out = jax.block_until_ready(fwd(pixel_values, weight, bias))
    assert out.shape == (B, nh * nw, E)
    assert out.dtype == pixel_values.dtype
    assert jnp.allclose(out, ref, atol=3e-2, rtol=3e-2)

    # f32 operand path (tighter tolerance).
    fwd_f32 = jax.jit(functools.partial(vit_patch_embeddings, patch_size=P,
                                        compute_dtype=jnp.float32))
    out_f32 = jax.block_until_ready(fwd_f32(pixel_values, weight, bias))
    assert jnp.allclose(out_f32, ref, atol=5e-3, rtol=5e-3)

    print("KERNEL_OK")
</pallas_src>

<mosaic_0001>
module attributes {stable_mosaic.version = 11 : i64} {
  func.func @_patch_embed_kernel(%arg0: i32, %arg1: memref<8x256xbf16, #tpu.memory_space<vmem>>, %arg2: memref<128x256xbf16, #tpu.memory_space<vmem>>, %arg3: memref<1x128xf32, #tpu.memory_space<vmem>>, %arg4: memref<8x128xf32, #tpu.memory_space<vmem>>) attributes {dimension_semantics = [#tpu.dimension_semantics<parallel>], iteration_bounds = array<i64: 1>, scalar_prefetch = 0 : i64, scratch_operands = 0 : i64, tpu.core_type = #tpu.core_type<tc>, window_params = [{transform_indices = @transform_0, window_bounds = array<i64: 8, 256>}, {pipeline_mode = #tpu.pipeline_mode<synchronous>, transform_indices = @transform_1, window_bounds = array<i64: 128, 256>}, {pipeline_mode = #tpu.pipeline_mode<synchronous>, transform_indices = @transform_2, window_bounds = array<i64: 1, 128>}, {transform_indices = @transform_3, window_bounds = array<i64: 8, 128>}]} {
    %c0 = arith.constant 0 : index
    %c0_0 = arith.constant 0 : index
    %0 = vector.load %arg1[%c0, %c0_0] : memref<8x256xbf16, #tpu.memory_space<vmem>>, vector<8x256xbf16>
    %c0_1 = arith.constant 0 : index
    %c0_2 = arith.constant 0 : index
    %1 = vector.load %arg2[%c0_1, %c0_2] : memref<128x256xbf16, #tpu.memory_space<vmem>>, vector<128x256xbf16>
    %cst = arith.constant dense<0.000000e+00> : vector<8x128xf32>
    %2 = tpu.matmul %0, %1, %cst {dimension_numbers = #tpu.dot_dimension_numbers<[1], [1], [0], [0], [0, 0, 1, 0], [], []>} : vector<8x256xbf16>, vector<128x256xbf16>, vector<8x128xf32> -> vector<8x128xf32>
    %c0_3 = arith.constant 0 : index
    %c0_4 = arith.constant 0 : index
    %3 = vector.load %arg3[%c0_3, %c0_4] : memref<1x128xf32, #tpu.memory_space<vmem>>, vector<1x128xf32>
    %4 = vector.broadcast %3 : vector<1x128xf32> to vector<8x128xf32>
    %5 = arith.addf %2, %4 : vector<8x128xf32>
    %c0_5 = arith.constant 0 : index
    %c0_6 = arith.constant 0 : index
    %6 = vector.load %arg4[%c0_5, %c0_6] : memref<8x128xf32, #tpu.memory_space<vmem>>, vector<8x128xf32>
    tpu.vector_store %arg4[%c0_5, %c0_6], %5 {strides = array<i32>} : memref<8x128xf32, #tpu.memory_space<vmem>>, vector<8x128xf32>,
    return
  }
  func.func @transform_0(%arg0: i32) -> (i32, i32) {
    %c0_i32 = arith.constant 0 : i32
    %c0_i32_0 = arith.constant 0 : i32
    return %arg0, %c0_i32 : i32, i32
  }
  func.func @transform_1(%arg0: i32) -> (i32, i32) {
    %c0_i32 = arith.constant 0 : i32
    %c0_i32_0 = arith.constant 0 : i32
    %c0_i32_1 = arith.constant 0 : i32
    return %c0_i32, %c0_i32_0 : i32, i32
  }
  func.func @transform_2(%arg0: i32) -> (i32, i32) {
    %c0_i32 = arith.constant 0 : i32
    %c0_i32_0 = arith.constant 0 : i32
    %c0_i32_1 = arith.constant 0 : i32
    return %c0_i32, %c0_i32_0 : i32, i32
  }
  func.func @transform_3(%arg0: i32) -> (i32, i32) {
    %c0_i32 = arith.constant 0 : i32
    %c0_i32_0 = arith.constant 0 : i32
    return %arg0, %c0_i32 : i32, i32
  }
}

</mosaic_0001>

<llo_original>
// kernel: vit_patch_embeddings.1
$region0: #{vit_patch_embeddings.1}
  #allocation0 [shape = 'u32[]', space=smem, size = 0x4, offset = 0x4, fixed_abs, tag = 'smem constant byte address 0x4 - core index']
  #allocation1 [shape = 'u32[72,128]{1,0:T(1,128)}', space=vmem, size = 0x9000, scoped, tag = 'internal scratch']
  %s0 = inlined_call_operand.vmem [shape: bf16[8,256], index: 0, kind: input, shape index: {}]
  %s1 = inlined_call_operand.vmem [shape: bf16[128,256], index: 1, kind: input, shape index: {}]
  %s2 = inlined_call_operand.vmem [shape: f32[1,128], index: 2, kind: input, shape index: {}]
  %s3 = inlined_call_operand.hbm [shape: f32[8,128], index: 3, kind: output, shape index: {}]
  %s4 = sld [smem:[#allocation0]]
  $region22: #{vit_patch_embeddings.1} parent=0
    _
  %s6 = ssub.s32 1, %s4
  %s7 = scalar_select 0, %s6, %s4
  $region1: #{vit_patch_embeddings.1} parent=0
    #allocation2 [shape = 'u8[4096]{0}', space=vmem, size = 0x1000, scoped, tag = 'output window, operand 0, single buffered']
    #allocation3 [shape = 's32[1]{0}', space=sflag, size = 0x4, scoped, tag = 'scoped memory for vit_patch_embeddings.1']
    %8 = vsyncpa [#allocation3], 0
    // Predicated region
    $region2: #{vit_patch_embeddings.1} parent=1 // pred_check
      _
    $region3: #{vit_patch_embeddings.1} parent=1 // pred_check_branch
      %10 = sbr.rel (0) target = $region5
    $region4: #{vit_patch_embeddings.1} parent=1 // pred_region
      _
    $region5: #{vit_patch_embeddings.1} parent=1 // pred_fallthru
      _
    // Predicated region
    $region6: #{vit_patch_embeddings.1} parent=1 // pred_check
      _
    $region7: #{vit_patch_embeddings.1} parent=1 // pred_check_branch
      %12 = sbr.rel (0) target = $region9
    $region8: #{vit_patch_embeddings.1} parent=1 // pred_region
      _
    $region9: #{vit_patch_embeddings.1} parent=1 // pred_fallthru
      _
    // Predicated region
    $region10: #{vit_patch_embeddings.1} parent=1 // pred_check
      _
    $region11: #{vit_patch_embeddings.1} parent=1 // pred_check_branch
      %14 = sbr.rel (0) target = $region13
    $region12: #{vit_patch_embeddings.1} parent=1 // pred_region
      _
    $region13: #{vit_patch_embeddings.1} parent=1 // pred_fallthru
      _
    %v15 = vld [vmem:[%s0] sm:$0xff]
    %v16 = vld [vmem:[%s1] sm:$0xff]
    %v17 = vld [vmem:[%s1 + $0x8] sm:$0xff]
    %v18 = vld [vmem:[%s1 + $0x10] sm:$0xff]
    %v19 = vld [vmem:[%s1 + $0x18] sm:$0xff]
    %v20 = vld [vmem:[%s1 + $0x20] sm:$0xff]
    %v21 = vld [vmem:[%s1 + $0x28] sm:$0xff]
    %v22 = vld [vmem:[%s1 + $0x30] sm:$0xff]
    %v23 = vld [vmem:[%s1 + $0x38] sm:$0xff]
    %v24 = vld [vmem:[%s1 + $0x40] sm:$0xff]
    %v25 = vld [vmem:[%s1 + $0x48] sm:$0xff]
    %v26 = vld [vmem:[%s1 + $0x50] sm:$0xff]
    %v27 = vld [vmem:[%s1 + $0x58] sm:$0xff]
    %v28 = vld [vmem:[%s1 + $0x60] sm:$0xff]
    %v29 = vld [vmem:[%s1 + $0x68] sm:$0xff]
    %v30 = vld [vmem:[%s1 + $0x70] sm:$0xff]
    %v31 = vld [vmem:[%s1 + $0x78] sm:$0xff]
    %v32 = vld [vmem:[%s2] sm:$0x1]
    %v34 = vperm.slane %v32, 0
    %v37 = vunpack.c.l.b16 %v15
    %v38 = vunpack.c.h.b16 %v15
    %v39 = vpack.c.b16 %v37, %v37
    %v40 = vpack.c.b16 %v38, %v38
    %v59 = vunpack.c.l.b16 %v16
    %v60 = vunpack.c.h.b16 %v16
    %v61 = vunpack.c.l.b16 %v17
    %v62 = vunpack.c.h.b16 %v17
    %v63 = vunpack.c.l.b16 %v18
    %v64 = vunpack.c.h.b16 %v18
    %v65 = vunpack.c.l.b16 %v19
    %v66 = vunpack.c.h.b16 %v19
    %v67 = vunpack.c.l.b16 %v20
    %v68 = vunpack.c.h.b16 %v20
    %v69 = vunpack.c.l.b16 %v21
    %v70 = vunpack.c.h.b16 %v21
    %v71 = vunpack.c.l.b16 %v22
    %v72 = vunpack.c.h.b16 %v22
    %v73 = vunpack.c.l.b16 %v23
    %v74 = vunpack.c.h.b16 %v23
    %v75 = vunpack.c.l.b16 %v24
    %v76 = vunpack.c.h.b16 %v24
    %v77 = vunpack.c.l.b16 %v25
    %v78 = vunpack.c.h.b16 %v25
    %v79 = vunpack.c.l.b16 %v26
    %v80 = vunpack.c.h.b16 %v26
    %v81 = vunpack.c.l.b16 %v27
    %v82 = vunpack.c.h.b16 %v27
    %v83 = vunpack.c.l.b16 %v28
    %v84 = vunpack.c.h.b16 %v28
    %v85 = vunpack.c.l.b16 %v29
    %v86 = vunpack.c.h.b16 %v29
    %v87 = vunpack.c.l.b16 %v30
    %v88 = vunpack.c.h.b16 %v30
    %v89 = vunpack.c.l.b16 %v31
    %v90 = vunpack.c.h.b16 %v31
    %v91 = vpack.c.b16 %v61, %v59
    %v92 = vpack.c.b16 %v62, %v60
    %v93 = vpack.c.b16 %v65, %v63
    %v94 = vpack.c.b16 %v66, %v64
    %v95 = vpack.c.b16 %v69, %v67
    %v96 = vpack.c.b16 %v70, %v68
    %v97 = vpack.c.b16 %v73, %v71
    %v98 = vpack.c.b16 %v74, %v72
    %v99 = vpack.c.b16 %v77, %v75
    %v100 = vpack.c.b16 %v78, %v76
    %v101 = vpack.c.b16 %v81, %v79
    %v102 = vpack.c.b16 %v82, %v80
    %v103 = vpack.c.b16 %v85, %v83
    %v104 = vpack.c.b16 %v86, %v84
    %v105 = vpack.c.b16 %v89, %v87
    %v106 = vpack.c.b16 %v90, %v88
    %123 = vmatpush.bf16.xpose.msra.mxu0 %v105
    %124 = vmatpush.bf16.xpose.msra.mxu0 %v103
    %125 = vmatpush.bf16.xpose.msra.mxu0 %v101
    %126 = vmatpush.bf16.xpose.msra.mxu0 %v99
    %127 = vmatpush.bf16.xpose.msra.mxu0 %v97
    %128 = vmatpush.bf16.xpose.msra.mxu0 %v95
    %129 = vmatpush.bf16.xpose.msra.mxu0 %v93
    %130 = vmatpush.bf16.xpose.msra.mxu0 %v91
    %131 = vmatmul.bf16.gmra.mxu0 %v39
    %v132 = vpop.f32.mrf.mxu0
    %v133 = vadd.f32 %v34, %v132
    %v134 = vpop.f32.mrf.mxu0
    %135 = vdwg.mxu0
    %136 = vmatpush.bf16.xpose.msra.mxu0 %v106
    %137 = vmatpush.bf16.xpose.msra.mxu0 %v104
    %138 = vmatpush.bf16.xpose.msra.mxu0 %v102
    %139 = vmatpush.bf16.xpose.msra.mxu0 %v100
    %140 = vmatpush.bf16.xpose.msra.mxu0 %v98
    %141 = vmatpush.bf16.xpose.msra.mxu0 %v96
    %142 = vmatpush.bf16.xpose.msra.mxu0 %v94
    %143 = vmatpush.bf16.xpose.msra.mxu0 %v92
    %144 = vmatmul.bf16.gmra.mxu0 %v40
    %v145 = vpop.f32.mrf.mxu0
    %v146 = vadd.f32 %v133, %v145
    %v147 = vpop.f32.mrf.mxu0
    %148 = vdwg.mxu0
    %149 = vst [vmem:[#allocation2] sm:$0xff] %v146
    // Predicated region
    $region14: #{vit_patch_embeddings.1} parent=1 // pred_check
      _
    $region15: #{vit_patch_embeddings.1} parent=1 // pred_check_branch
      %151 = sbr.rel (0) target = $region17
    $region16: #{vit_patch_embeddings.1} parent=1 // pred_region
      %153 = vsyncadd [#allocation3], 0
      %s155 = sshll.u32 [#allocation2], 4
      %s156 = int_to_ptr.vmem [resolvable:$true] %s155
      %s157 = sshll.u32 %s3, 4
      %s158 = int_to_ptr.hbm [resolvable:$true] %s157
      %160 = dma.vmem_to_hbm [thread:$0]  %s156, 128, %s158, [#allocation3]
    $region17: #{vit_patch_embeddings.1} parent=1 // pred_fallthru
      _
    // Predicated region
    $region18: #{vit_patch_embeddings.1} parent=1 // pred_check
      _
    $region19: #{vit_patch_embeddings.1} parent=1 // pred_check_branch
      %162 = sbr.rel (0) target = $region21
    $region20: #{vit_patch_embeddings.1} parent=1 // pred_region
      %164 = dma.done [#allocation3], 128
    $region21: #{vit_patch_embeddings.1} parent=1 // pred_fallthru
      _
    %165 = vsyncpa [#allocation3], 1

</llo_original>
